<compile_context>
chip_gen: v5e
topology: v5e:2x2
jax: 0.10.0
libtpu: 0.0.40
codegen_flags: <defaults>
</compile_context>

<pallas_src>
import jax
import jax.numpy as jnp
from jax.experimental import pallas as pl
from jax.experimental.pallas import tpu as pltpu


def _gnn_cell_kernel(adj_ref, bi_ref, xn_ref, xg_ref, xd_ref,
                     inv_dst_g_ref, inv_src_g_ref, inv_gene_bi_ref, inv_drug_bi_ref,
                     w_conv_ref, w_d2g_ref, w_g2d_ref,
                     b_conv_ref, b_d2g_ref, b_g2d_ref,
                     node_out_ref, drug_out_ref):
    """Fused GNN_Cell forward: 3 GCNs with folded sym-norm + bias + ReLU + concat."""
    f32 = jnp.float32
    half = w_conv_ref.shape[1]

    adj = adj_ref[...]          # (n_gene, n_gene)  raw 0/1 adjacency (A[dst, src])
    bi = bi_ref[...]            # (n_gene, n_drug)  raw bipartite adjacency (gene <- drug)
    xn = xn_ref[...]            # (n_gene, in_dim)  homogeneous-conv features (node_emb)
    xg = xg_ref[...]            # (n_gene, in_dim)  bipartite 'gene' features
    xd = xd_ref[...]            # (n_drug, in_dim)  bipartite 'drug' features

    def gcn(a, x, w_ref, inv_src, inv_dst, b_ref, transpose_adj=False):
        # GraphConv norm='both' with the D^-1/2 scaling folded into the (rows x half)
        # feature operand instead of scaling the (rows x rows) adjacency.
        h = jnp.dot(x, w_ref[...], preferred_element_type=f32) * inv_src
        if transpose_adj:
            # A^T @ h without materializing A^T: contract axis 0 of both operands.
            agg = jax.lax.dot_general(a, h, (((0,), (0,)), ((), ())),
                                      preferred_element_type=f32)
        else:
            agg = jnp.dot(a, h, preferred_element_type=f32)
        return agg * inv_dst + b_ref[...]

    # Homogeneous gene-graph conv -> left lane half, with ReLU (act() in the PyTorch forward).
    homo = gcn(adj, xn, w_conv_ref, inv_src_g_ref[...], inv_dst_g_ref[...], b_conv_ref)
    node_out_ref[:, :half] = jnp.maximum(homo, 0.0).astype(node_out_ref.dtype)

    # drug -> gene bipartite conv -> right lane half (no activation before the concat).
    d2g = gcn(bi, xd, w_d2g_ref, inv_drug_bi_ref[...], inv_gene_bi_ref[...], b_d2g_ref)
    node_out_ref[:, half:] = d2g.astype(node_out_ref.dtype)

    # gene -> drug bipartite conv on the SAME bi buffer (transposed contraction).
    g2d = gcn(bi, xg, w_g2d_ref, inv_gene_bi_ref[...], inv_drug_bi_ref[...], b_g2d_ref,
              transpose_adj=True)
    drug_out_ref[...] = g2d.astype(drug_out_ref.dtype)


def gnn_cell_forward(adj, node_emb, bi_adj_gene_from_drug, bipartite_node_emb, params):
    """Mirrors GNN_Cell.forward(graph, node_emb, bipartite_graph, bipartite_node_emb)."""
    n_gene, n_drug = bi_adj_gene_from_drug.shape
    half = params["w_conv"].shape[1]
    hidden = 2 * half

    # DGL GraphConv norm='both' degree scaling: deg.clamp(min=1) ** -0.5.
    # Precomputed here (tiny O(N) reduces) so the kernel never touches a normalized O(N^2)
    # adjacency copy and stays single-pass / tiling-ready.  The bipartite vectors are shared
    # by both edge directions since sym_norm(A^T) == sym_norm(A)^T.
    def inv_sqrt_deg(deg):
        return jax.lax.rsqrt(jnp.maximum(deg, 1.0)).astype(jnp.float32)

    inv_dst_g = inv_sqrt_deg(jnp.sum(adj, axis=1, keepdims=True))                      # (n_gene, 1)
    inv_src_g = inv_sqrt_deg(jnp.sum(adj, axis=0)[:, None])                            # (n_gene, 1)
    inv_gene_bi = inv_sqrt_deg(jnp.sum(bi_adj_gene_from_drug, axis=1, keepdims=True))  # (n_gene, 1)
    inv_drug_bi = inv_sqrt_deg(jnp.sum(bi_adj_gene_from_drug, axis=0)[:, None])        # (n_drug, 1)

    xn = node_emb
    xg = bipartite_node_emb["gene"]
    xd = bipartite_node_emb["drug"]
    b_conv = params["b_conv"].reshape(1, half)
    b_d2g = params["b_d2g"].reshape(1, half)
    b_g2d = params["b_g2d"].reshape(1, half)

    operands = (adj, bi_adj_gene_from_drug, xn, xg, xd,
                inv_dst_g, inv_src_g, inv_gene_bi, inv_drug_bi,
                params["w_conv"], params["w_d2g"], params["w_g2d"],
                b_conv, b_d2g, b_g2d)

    # Explicit scoped-VMEM budget: all operands + outputs resident once, 2x headroom,
    # capped well below v7x's 64 MiB physical VMEM.
    in_bytes = sum(int(x.size) * 4 for x in operands)
    out_bytes = (n_gene * hidden + n_drug * half) * 4
    vmem_limit = int(min(48 * 2**20, max(4 * 2**20, 2 * (in_bytes + out_bytes))))

    vmem = pl.BlockSpec(memory_space=pltpu.MemorySpace.VMEM)
    node_out, drug_out = pl.pallas_call(
        _gnn_cell_kernel,
        out_shape=(jax.ShapeDtypeStruct((n_gene, hidden), jnp.float32),
                   jax.ShapeDtypeStruct((n_drug, half), jnp.float32)),
        in_specs=[vmem] * len(operands),
        out_specs=(vmem, vmem),
        compiler_params=pltpu.CompilerParams(vmem_limit_bytes=vmem_limit),
    )(*operands)

    # dict write-back as in PyTorch: bipartite_node_emb['gene'] = concatenated node_emb.
    bi_out = {"gene": node_out, "drug": drug_out}
    return node_out, bi_out


def _gnn_cell_reference(adj, node_emb, bi_adj, bi_emb, params):
    """Pure-JAX reference of the PyTorch forward (explicit normalized adjacencies)."""
    def sym_norm(a):
        inv_dst = jax.lax.rsqrt(jnp.maximum(jnp.sum(a, axis=1, keepdims=True), 1.0))
        inv_src = jax.lax.rsqrt(jnp.maximum(jnp.sum(a, axis=0, keepdims=True), 1.0))
        return inv_dst * a * inv_src

    a_n = sym_norm(adj)
    gd_n = sym_norm(bi_adj)
    dg_n = sym_norm(bi_adj.T)
    h = jnp.maximum(a_n @ node_emb @ params["w_conv"] + params["b_conv"], 0.0)
    gene = gd_n @ bi_emb["drug"] @ params["w_d2g"] + params["b_d2g"]
    drug = dg_n @ bi_emb["gene"] @ params["w_g2d"] + params["b_g2d"]
    node = jnp.concatenate([h, gene], axis=1)
    return node, {"gene": node, "drug": drug}


if __name__ == "__main__":
    key = jax.random.PRNGKey(0)
    keys = jax.random.split(key, 8)

    # Small shapes consistent with the module.
    n_gene, n_drug = 16, 8
    in_dim, hidden_dim = 32, 32
    half = hidden_dim // 2  # bipartite_conv is not None -> conv outputs hidden_dim // 2

    # Node features.
    gene_emb = jax.random.normal(keys[0], (n_gene, in_dim), jnp.float32)
    drug_emb = jax.random.normal(keys[1], (n_drug, in_dim), jnp.float32)
    bipartite_node_emb = {"gene": gene_emb, "drug": drug_emb}

    # Graph structure (dense, deterministic): homogeneous gene graph + bipartite gene<-drug.
    adj = (jax.random.uniform(keys[2], (n_gene, n_gene)) < 0.3).astype(jnp.float32)
    adj = jnp.maximum(adj, jnp.eye(n_gene, dtype=jnp.float32))  # add self loops
    bi_adj = (jax.random.uniform(keys[3], (n_gene, n_drug)) < 0.4).astype(jnp.float32)

    # Deterministic parameter init (GraphConv weight + bias per relation).
    params = {
        "w_conv": 0.1 * jax.random.normal(keys[4], (in_dim, half), jnp.float32),
        "b_conv": jnp.zeros((half,), jnp.float32),
        "w_d2g": 0.1 * jax.random.normal(keys[5], (in_dim, half), jnp.float32),
        "b_d2g": jnp.zeros((half,), jnp.float32),
        "w_g2d": 0.1 * jax.random.normal(keys[6], (in_dim, half), jnp.float32),
        "b_g2d": jnp.zeros((half,), jnp.float32),
    }

    fwd = jax.jit(gnn_cell_forward)  # O(N) degree prologue + one fused Pallas launch
    node_out, bi_out = fwd(adj, gene_emb, bi_adj, bipartite_node_emb, params)
    jax.block_until_ready(node_out)
    jax.block_until_ready(bi_out["gene"])
    jax.block_until_ready(bi_out["drug"])

    assert node_out.shape == (n_gene, hidden_dim)
    assert bi_out["gene"].shape == (n_gene, hidden_dim)
    assert bi_out["drug"].shape == (n_drug, half)

    # Correctness against a pure-JAX reference of the PyTorch forward (f32 everywhere).
    ref_node, ref_bi = _gnn_cell_reference(adj, gene_emb, bi_adj, bipartite_node_emb, params)
    assert jnp.allclose(node_out, ref_node, rtol=1e-4, atol=1e-4)
    assert jnp.allclose(bi_out["drug"], ref_bi["drug"], rtol=1e-4, atol=1e-4)

    print("KERNEL_OK")
</pallas_src>

<mosaic_0001>
module attributes {stable_mosaic.version = 11 : i64} {
  func.func @_gnn_cell_kernel(%arg0: memref<16x16xf32, #tpu.memory_space<vmem>>, %arg1: memref<16x8xf32, #tpu.memory_space<vmem>>, %arg2: memref<16x32xf32, #tpu.memory_space<vmem>>, %arg3: memref<16x32xf32, #tpu.memory_space<vmem>>, %arg4: memref<8x32xf32, #tpu.memory_space<vmem>>, %arg5: memref<16x1xf32, #tpu.memory_space<vmem>>, %arg6: memref<16x1xf32, #tpu.memory_space<vmem>>, %arg7: memref<16x1xf32, #tpu.memory_space<vmem>>, %arg8: memref<8x1xf32, #tpu.memory_space<vmem>>, %arg9: memref<32x16xf32, #tpu.memory_space<vmem>>, %arg10: memref<32x16xf32, #tpu.memory_space<vmem>>, %arg11: memref<32x16xf32, #tpu.memory_space<vmem>>, %arg12: memref<1x16xf32, #tpu.memory_space<vmem>>, %arg13: memref<1x16xf32, #tpu.memory_space<vmem>>, %arg14: memref<1x16xf32, #tpu.memory_space<vmem>>, %arg15: memref<16x32xf32, #tpu.memory_space<vmem>>, %arg16: memref<8x16xf32, #tpu.memory_space<vmem>>) attributes {dimension_semantics = [], scalar_prefetch = 0 : i64, scratch_operands = 0 : i64, tpu.core_type = #tpu.core_type<tc>} {
    %c0 = arith.constant 0 : index
    %c0_0 = arith.constant 0 : index
    %0 = vector.load %arg0[%c0, %c0_0] : memref<16x16xf32, #tpu.memory_space<vmem>>, vector<16x16xf32>
    %c0_1 = arith.constant 0 : index
    %c0_2 = arith.constant 0 : index
    %1 = vector.load %arg1[%c0_1, %c0_2] : memref<16x8xf32, #tpu.memory_space<vmem>>, vector<16x8xf32>
    %c0_3 = arith.constant 0 : index
    %c0_4 = arith.constant 0 : index
    %2 = vector.load %arg2[%c0_3, %c0_4] : memref<16x32xf32, #tpu.memory_space<vmem>>, vector<16x32xf32>
    %c0_5 = arith.constant 0 : index
    %c0_6 = arith.constant 0 : index
    %3 = vector.load %arg3[%c0_5, %c0_6] : memref<16x32xf32, #tpu.memory_space<vmem>>, vector<16x32xf32>
    %c0_7 = arith.constant 0 : index
    %c0_8 = arith.constant 0 : index
    %4 = vector.load %arg4[%c0_7, %c0_8] : memref<8x32xf32, #tpu.memory_space<vmem>>, vector<8x32xf32>
    %c0_9 = arith.constant 0 : index
    %c0_10 = arith.constant 0 : index
    %5 = vector.load %arg6[%c0_9, %c0_10] : memref<16x1xf32, #tpu.memory_space<vmem>>, vector<16x1xf32>
    %c0_11 = arith.constant 0 : index
    %c0_12 = arith.constant 0 : index
    %6 = vector.load %arg5[%c0_11, %c0_12] : memref<16x1xf32, #tpu.memory_space<vmem>>, vector<16x1xf32>
    %c0_13 = arith.constant 0 : index
    %c0_14 = arith.constant 0 : index
    %7 = vector.load %arg9[%c0_13, %c0_14] : memref<32x16xf32, #tpu.memory_space<vmem>>, vector<32x16xf32>
    %cst = arith.constant dense<0.000000e+00> : vector<16x16xf32>
    %8 = tpu.matmul %2, %7, %cst {dimension_numbers = #tpu.dot_dimension_numbers<[1], [0], [0], [1], [0, 0, 1, 1], [], []>} : vector<16x32xf32>, vector<32x16xf32>, vector<16x16xf32> -> vector<16x16xf32>
    %9 = vector.broadcast %5 : vector<16x1xf32> to vector<16x16xf32>
    %10 = arith.mulf %8, %9 : vector<16x16xf32>
    %cst_15 = arith.constant dense<0.000000e+00> : vector<16x16xf32>
    %11 = tpu.matmul %0, %10, %cst_15 {dimension_numbers = #tpu.dot_dimension_numbers<[1], [0], [0], [1], [0, 0, 1, 1], [], []>} : vector<16x16xf32>, vector<16x16xf32>, vector<16x16xf32> -> vector<16x16xf32>
    %12 = vector.broadcast %6 : vector<16x1xf32> to vector<16x16xf32>
    %13 = arith.mulf %11, %12 : vector<16x16xf32>
    %c0_16 = arith.constant 0 : index
    %c0_17 = arith.constant 0 : index
    %14 = vector.load %arg12[%c0_16, %c0_17] : memref<1x16xf32, #tpu.memory_space<vmem>>, vector<1x16xf32>
    %15 = vector.broadcast %14 : vector<1x16xf32> to vector<16x16xf32>
    %16 = arith.addf %13, %15 : vector<16x16xf32>
    %cst_18 = arith.constant 0.000000e+00 : f32
    %17 = vector.broadcast %cst_18 : f32 to vector<16x16xf32>
    %18 = arith.maximumf %16, %17 : vector<16x16xf32>
    %c0_19 = arith.constant 0 : index
    %c0_20 = arith.constant 0 : index
    %19 = vector.load %arg15[%c0_19, %c0_20] : memref<16x32xf32, #tpu.memory_space<vmem>>, vector<16x16xf32>
    tpu.vector_store %arg15[%c0_19, %c0_20], %18 {strides = array<i32>} : memref<16x32xf32, #tpu.memory_space<vmem>>, vector<16x16xf32>,
    %c0_21 = arith.constant 0 : index
    %c0_22 = arith.constant 0 : index
    %20 = vector.load %arg8[%c0_21, %c0_22] : memref<8x1xf32, #tpu.memory_space<vmem>>, vector<8x1xf32>
    %c0_23 = arith.constant 0 : index
    %c0_24 = arith.constant 0 : index
    %21 = vector.load %arg7[%c0_23, %c0_24] : memref<16x1xf32, #tpu.memory_space<vmem>>, vector<16x1xf32>
    %c0_25 = arith.constant 0 : index
    %c0_26 = arith.constant 0 : index
    %22 = vector.load %arg10[%c0_25, %c0_26] : memref<32x16xf32, #tpu.memory_space<vmem>>, vector<32x16xf32>
    %cst_27 = arith.constant dense<0.000000e+00> : vector<8x16xf32>
    %23 = tpu.matmul %4, %22, %cst_27 {dimension_numbers = #tpu.dot_dimension_numbers<[1], [0], [0], [1], [0, 0, 1, 1], [], []>} : vector<8x32xf32>, vector<32x16xf32>, vector<8x16xf32> -> vector<8x16xf32>
    %24 = vector.broadcast %20 : vector<8x1xf32> to vector<8x16xf32>
    %25 = arith.mulf %23, %24 : vector<8x16xf32>
    %cst_28 = arith.constant dense<0.000000e+00> : vector<16x16xf32>
    %26 = tpu.matmul %1, %25, %cst_28 {dimension_numbers = #tpu.dot_dimension_numbers<[1], [0], [0], [1], [0, 0, 1, 1], [], []>} : vector<16x8xf32>, vector<8x16xf32>, vector<16x16xf32> -> vector<16x16xf32>
    %27 = vector.broadcast %21 : vector<16x1xf32> to vector<16x16xf32>
    %28 = arith.mulf %26, %27 : vector<16x16xf32>
    %c0_29 = arith.constant 0 : index
    %c0_30 = arith.constant 0 : index
    %29 = vector.load %arg13[%c0_29, %c0_30] : memref<1x16xf32, #tpu.memory_space<vmem>>, vector<1x16xf32>
    %30 = vector.broadcast %29 : vector<1x16xf32> to vector<16x16xf32>
    %31 = arith.addf %28, %30 : vector<16x16xf32>
    %c0_31 = arith.constant 0 : index
    %c16 = arith.constant 16 : index
    %32 = vector.load %arg15[%c0_31, %c16] : memref<16x32xf32, #tpu.memory_space<vmem>>, vector<16x16xf32>
    tpu.vector_store %arg15[%c0_31, %c16], %31 {strides = array<i32>} : memref<16x32xf32, #tpu.memory_space<vmem>>, vector<16x16xf32>,
    %c0_32 = arith.constant 0 : index
    %c0_33 = arith.constant 0 : index
    %33 = vector.load %arg7[%c0_32, %c0_33] : memref<16x1xf32, #tpu.memory_space<vmem>>, vector<16x1xf32>
    %c0_34 = arith.constant 0 : index
    %c0_35 = arith.constant 0 : index
    %34 = vector.load %arg8[%c0_34, %c0_35] : memref<8x1xf32, #tpu.memory_space<vmem>>, vector<8x1xf32>
    %c0_36 = arith.constant 0 : index
    %c0_37 = arith.constant 0 : index
    %35 = vector.load %arg11[%c0_36, %c0_37] : memref<32x16xf32, #tpu.memory_space<vmem>>, vector<32x16xf32>
    %cst_38 = arith.constant dense<0.000000e+00> : vector<16x16xf32>
    %36 = tpu.matmul %3, %35, %cst_38 {dimension_numbers = #tpu.dot_dimension_numbers<[1], [0], [0], [1], [0, 0, 1, 1], [], []>} : vector<16x32xf32>, vector<32x16xf32>, vector<16x16xf32> -> vector<16x16xf32>
    %37 = vector.broadcast %33 : vector<16x1xf32> to vector<16x16xf32>
    %38 = arith.mulf %36, %37 : vector<16x16xf32>
    %cst_39 = arith.constant dense<0.000000e+00> : vector<8x16xf32>
    %39 = tpu.matmul %1, %38, %cst_39 {dimension_numbers = #tpu.dot_dimension_numbers<[0], [0], [1], [1], [0, 1, 1, 1], [], []>} : vector<16x8xf32>, vector<16x16xf32>, vector<8x16xf32> -> vector<8x16xf32>
    %40 = vector.broadcast %34 : vector<8x1xf32> to vector<8x16xf32>
    %41 = arith.mulf %39, %40 : vector<8x16xf32>
    %c0_40 = arith.constant 0 : index
    %c0_41 = arith.constant 0 : index
    %42 = vector.load %arg14[%c0_40, %c0_41] : memref<1x16xf32, #tpu.memory_space<vmem>>, vector<1x16xf32>
    %43 = vector.broadcast %42 : vector<1x16xf32> to vector<8x16xf32>
    %44 = arith.addf %41, %43 : vector<8x16xf32>
    %c0_42 = arith.constant 0 : index
    %c0_43 = arith.constant 0 : index
    %45 = vector.load %arg16[%c0_42, %c0_43] : memref<8x16xf32, #tpu.memory_space<vmem>>, vector<8x16xf32>
    tpu.vector_store %arg16[%c0_42, %c0_43], %44 {strides = array<i32>} : memref<8x16xf32, #tpu.memory_space<vmem>>, vector<8x16xf32>,
    return
  }
}

</mosaic_0001>

<llo_original>
// kernel: gnn_cell_forward.1
$region0: #{gnn_cell_forward.1}
  #allocation0 [shape = 'u32[]', space=smem, size = 0x4, offset = 0x4, fixed_abs, tag = 'smem constant byte address 0x4 - core index']
  #allocation1 [shape = 'u32[72,128]{1,0:T(1,128)}', space=vmem, size = 0x9000, scoped, tag = 'internal scratch']
  %s0 = inlined_call_operand.vmem [shape: f32[16,16], index: 0, kind: input, shape index: {}]
  %s1 = inlined_call_operand.vmem [shape: f32[16,8], index: 1, kind: input, shape index: {}]
  %s2 = inlined_call_operand.vmem [shape: f32[16,32], index: 2, kind: input, shape index: {}]
  %s3 = inlined_call_operand.vmem [shape: f32[16,32], index: 3, kind: input, shape index: {}]
  %s4 = inlined_call_operand.vmem [shape: f32[8,32], index: 4, kind: input, shape index: {}]
  %s5 = inlined_call_operand.vmem [shape: f32[16,1], index: 5, kind: input, shape index: {}]
  %s6 = inlined_call_operand.vmem [shape: f32[16,1], index: 6, kind: input, shape index: {}]
  %s7 = inlined_call_operand.vmem [shape: f32[16,1], index: 7, kind: input, shape index: {}]
  %s8 = inlined_call_operand.vmem [shape: f32[8,1], index: 8, kind: input, shape index: {}]
  %s9 = inlined_call_operand.vmem [shape: f32[32,16], index: 9, kind: input, shape index: {}]
  %s10 = inlined_call_operand.vmem [shape: f32[32,16], index: 10, kind: input, shape index: {}]
  %s11 = inlined_call_operand.vmem [shape: f32[32,16], index: 11, kind: input, shape index: {}]
  %s12 = inlined_call_operand.vmem [shape: f32[1,16], index: 12, kind: input, shape index: {}]
  %s13 = inlined_call_operand.vmem [shape: f32[1,16], index: 13, kind: input, shape index: {}]
  %s14 = inlined_call_operand.vmem [shape: f32[1,16], index: 14, kind: input, shape index: {}]
  %s15 = inlined_call_operand.vmem [shape: f32[16,32], index: 15, kind: output, shape index: {0}]
  %s16 = inlined_call_operand.hbm [shape: f32[8,16], index: 16, kind: output, shape index: {1}]
  %17 = xla_tuple %s15, %s16
  %s18 = sld [smem:[#allocation0]]
  $region78: #{gnn_cell_forward.1} parent=0
    _
  %s20 = ssub.s32 1, %s18
  %s21 = scalar_select 0, %s20, %s18
  $region1: #{gnn_cell_forward.1} parent=0
    #allocation2 [shape = 'u8[4096]{0}', space=vmem, size = 0x1000, scoped, tag = 'output window, operand 1, single buffered']
    #allocation3 [shape = 's32[1]{0}', space=sflag, size = 0x4, scoped, tag = 'scoped memory for gnn_cell_forward.1']
    %22 = vsyncpa [#allocation3], 0
    // Predicated region
    $region2: #{gnn_cell_forward.1} parent=1 // pred_check
      _
    $region3: #{gnn_cell_forward.1} parent=1 // pred_check_branch
      %24 = sbr.rel (0) target = $region5
    $region4: #{gnn_cell_forward.1} parent=1 // pred_region
      _
    $region5: #{gnn_cell_forward.1} parent=1 // pred_fallthru
      _
    // Predicated region
    $region6: #{gnn_cell_forward.1} parent=1 // pred_check
      _
    $region7: #{gnn_cell_forward.1} parent=1 // pred_check_branch
      %26 = sbr.rel (0) target = $region9
    $region8: #{gnn_cell_forward.1} parent=1 // pred_region
      _
    $region9: #{gnn_cell_forward.1} parent=1 // pred_fallthru
      _
    // Predicated region
    $region10: #{gnn_cell_forward.1} parent=1 // pred_check
      _
    $region11: #{gnn_cell_forward.1} parent=1 // pred_check_branch
      %28 = sbr.rel (0) target = $region13
    $region12: #{gnn_cell_forward.1} parent=1 // pred_region
      _
    $region13: #{gnn_cell_forward.1} parent=1 // pred_fallthru
      _
    // Predicated region
    $region14: #{gnn_cell_forward.1} parent=1 // pred_check
      _
    $region15: #{gnn_cell_forward.1} parent=1 // pred_check_branch
      %30 = sbr.rel (0) target = $region17
    $region16: #{gnn_cell_forward.1} parent=1 // pred_region
      _
    $region17: #{gnn_cell_forward.1} parent=1 // pred_fallthru
      _
    // Predicated region
    $region18: #{gnn_cell_forward.1} parent=1 // pred_check
      _
    $region19: #{gnn_cell_forward.1} parent=1 // pred_check_branch
      %32 = sbr.rel (0) target = $region21
    $region20: #{gnn_cell_forward.1} parent=1 // pred_region
      _
    $region21: #{gnn_cell_forward.1} parent=1 // pred_fallthru
      _
    // Predicated region
    $region22: #{gnn_cell_forward.1} parent=1 // pred_check
      _
    $region23: #{gnn_cell_forward.1} parent=1 // pred_check_branch
      %34 = sbr.rel (0) target = $region25
    $region24: #{gnn_cell_forward.1} parent=1 // pred_region
      _
    $region25: #{gnn_cell_forward.1} parent=1 // pred_fallthru
      _
    // Predicated region
    $region26: #{gnn_cell_forward.1} parent=1 // pred_check
      _
    $region27: #{gnn_cell_forward.1} parent=1 // pred_check_branch
      %36 = sbr.rel (0) target = $region29
    $region28: #{gnn_cell_forward.1} parent=1 // pred_region
      _
    $region29: #{gnn_cell_forward.1} parent=1 // pred_fallthru
      _
    // Predicated region
    $region30: #{gnn_cell_forward.1} parent=1 // pred_check
      _
    $region31: #{gnn_cell_forward.1} parent=1 // pred_check_branch
      %38 = sbr.rel (0) target = $region33
    $region32: #{gnn_cell_forward.1} parent=1 // pred_region
      _
    $region33: #{gnn_cell_forward.1} parent=1 // pred_fallthru
      _
    // Predicated region
    $region34: #{gnn_cell_forward.1} parent=1 // pred_check
      _
    $region35: #{gnn_cell_forward.1} parent=1 // pred_check_branch
      %40 = sbr.rel (0) target = $region37
    $region36: #{gnn_cell_forward.1} parent=1 // pred_region
      _
    $region37: #{gnn_cell_forward.1} parent=1 // pred_fallthru
      _
    // Predicated region
    $region38: #{gnn_cell_forward.1} parent=1 // pred_check
      _
    $region39: #{gnn_cell_forward.1} parent=1 // pred_check_branch
      %42 = sbr.rel (0) target = $region41
    $region40: #{gnn_cell_forward.1} parent=1 // pred_region
      _
    $region41: #{gnn_cell_forward.1} parent=1 // pred_fallthru
      _
    // Predicated region
    $region42: #{gnn_cell_forward.1} parent=1 // pred_check
      _
    $region43: #{gnn_cell_forward.1} parent=1 // pred_check_branch
      %44 = sbr.rel (0) target = $region45
    $region44: #{gnn_cell_forward.1} parent=1 // pred_region
      _
    $region45: #{gnn_cell_forward.1} parent=1 // pred_fallthru
      _
    // Predicated region
    $region46: #{gnn_cell_forward.1} parent=1 // pred_check
      _
    $region47: #{gnn_cell_forward.1} parent=1 // pred_check_branch
      %46 = sbr.rel (0) target = $region49
    $region48: #{gnn_cell_forward.1} parent=1 // pred_region
      _
    $region49: #{gnn_cell_forward.1} parent=1 // pred_fallthru
      _
    // Predicated region
    $region50: #{gnn_cell_forward.1} parent=1 // pred_check
      _
    $region51: #{gnn_cell_forward.1} parent=1 // pred_check_branch
      %48 = sbr.rel (0) target = $region53
    $region52: #{gnn_cell_forward.1} parent=1 // pred_region
      _
    $region53: #{gnn_cell_forward.1} parent=1 // pred_fallthru
      _
    // Predicated region
    $region54: #{gnn_cell_forward.1} parent=1 // pred_check
      _
    $region55: #{gnn_cell_forward.1} parent=1 // pred_check_branch
      %50 = sbr.rel (0) target = $region57
    $region56: #{gnn_cell_forward.1} parent=1 // pred_region
      _
    $region57: #{gnn_cell_forward.1} parent=1 // pred_fallthru
      _
    // Predicated region
    $region58: #{gnn_cell_forward.1} parent=1 // pred_check
      _
    $region59: #{gnn_cell_forward.1} parent=1 // pred_check_branch
      %52 = sbr.rel (0) target = $region61
    $region60: #{gnn_cell_forward.1} parent=1 // pred_region
      _
    $region61: #{gnn_cell_forward.1} parent=1 // pred_fallthru
      _
    %v53 = vld [vmem:[%s0] sm:$0xff]
    %v54 = vld [vmem:[%s0 + $0x8] sm:$0xff]
    %v55 = vld [vmem:[%s1] sm:$0xff]
    %v56 = vld [vmem:[%s1 + $0x8] sm:$0xff]
    %v57 = vld [vmem:[%s2] sm:$0xff]
    %v58 = vld [vmem:[%s2 + $0x8] sm:$0xff]
    %v59 = vld [vmem:[%s3] sm:$0xff]
    %v60 = vld [vmem:[%s3 + $0x8] sm:$0xff]
    %v61 = vld [vmem:[%s4] sm:$0xff]
    %v62 = vld [vmem:[%s6] sm:$0xff]
    %v63 = vld [vmem:[%s6 + $0x8] sm:$0xff]
    %v64 = vld [vmem:[%s5] sm:$0xff]
    %v65 = vld [vmem:[%s5 + $0x8] sm:$0xff]
    %v66 = vld [vmem:[%s9] sm:$0xff]
    %v67 = vld [vmem:[%s9 + $0x8] sm:$0xff]
    %v68 = vld [vmem:[%s9 + $0x10] sm:$0xff]
    %v69 = vld [vmem:[%s9 + $0x18] sm:$0xff]
    %vm70 = vcmask 261120
    %v72 = vsel %vm70, %v57, 0
    %v75 = vsel %vm70, %v58, 0
    %77 = vmatpush.msra.mxu0 0.0
    %78 = vmatpush.msra.mxu0 0.0
    %79 = vmatpush.msra.mxu0 0.0
    %80 = vmatpush.msra.mxu0 0.0
    %81 = vmatpush.msra.mxu0 0.0
    %82 = vmatpush.msra.mxu0 0.0
    %83 = vmatpush.msra.mxu0 0.0
    %84 = vmatpush.msra.mxu0 0.0
    %85 = vmatpush.msra.mxu0 0.0
    %86 = vmatpush.msra.mxu0 0.0
    %87 = vmatpush.msra.mxu0 0.0
    %88 = vmatpush.msra.mxu0 0.0
    %89 = vmatpush.msra.mxu0 %v69
    %90 = vmatpush.msra.mxu0 %v68
    %91 = vmatpush.msra.mxu0 %v67
    %92 = vmatpush.msra.mxu0 %v66
    %93 = vmatmul.f32.gmra.mxu0 %v72
    %v94 = vpop.f32.mrf.mxu0
    %v95 = vadd.f32 0.0, %v94
    %96 = vmatmul.f32.gmra.mxu0 %v75
    %v97 = vpop.f32.mrf.mxu0
    %v98 = vadd.f32 0.0, %v97
    %99 = vdwg.mxu0
    %101 = vset.pattern.permute.xlu0 0
    %102 = vperm.xlu0 %101, %v62
    %v103 = vpop.permute.xlu0 %102
    %106 = vset.pattern.permute.xlu0 0
    %107 = vperm.xlu0 %106, %v63
    %v108 = vpop.permute.xlu0 %107
    %v110 = vmul.f32 %v95, %v103
    %v111 = vmul.f32 %v98, %v108
    %vm112 = vcmask 130048
    %v114 = vsel %vm112, %v53, 0
    %v117 = vsel %vm112, %v54, 0
    %119 = vmatpush.msra.mxu0 0.0
    %120 = vmatpush.msra.mxu0 0.0
    %121 = vmatpush.msra.mxu0 0.0
    %122 = vmatpush.msra.mxu0 0.0
    %123 = vmatpush.msra.mxu0 0.0
    %124 = vmatpush.msra.mxu0 0.0
    %125 = vmatpush.msra.mxu0 0.0
    %126 = vmatpush.msra.mxu0 0.0
    %127 = vmatpush.msra.mxu0 0.0
    %128 = vmatpush.msra.mxu0 0.0
    %129 = vmatpush.msra.mxu0 0.0
    %130 = vmatpush.msra.mxu0 0.0
    %131 = vmatpush.msra.mxu0 0.0
    %132 = vmatpush.msra.mxu0 0.0
    %133 = vmatpush.msra.mxu0 %v111
    %134 = vmatpush.msra.mxu0 %v110
    %135 = vmatmul.f32.gmra.mxu0 %v114
    %v136 = vpop.f32.mrf.mxu0
    %v137 = vadd.f32 0.0, %v136
    %138 = vmatmul.f32.gmra.mxu0 %v117
    %v139 = vpop.f32.mrf.mxu0
    %v140 = vadd.f32 0.0, %v139
    %141 = vdwg.mxu0
    %143 = vset.pattern.permute.xlu0 0
    %144 = vperm.xlu0 %143, %v64
    %v145 = vpop.permute.xlu0 %144
    %148 = vset.pattern.permute.xlu0 0
    %149 = vperm.xlu0 %148, %v65
    %v150 = vpop.permute.xlu0 %149
    %v152 = vmul.f32 %v137, %v145
    %v153 = vmul.f32 %v140, %v150
    %v154 = vld [vmem:[%s12] sm:$0x1]
    %v156 = vperm.slane %v154, 0
    %v158 = vadd.f32 %v152, %v156
    %v159 = vadd.f32 %v153, %v156
    %v160 = vmax.f32 %v158, 0.0
    %v161 = vmax.f32 %v159, 0.0
    %162 = vst.msk [vmem:[%s15] sm:$0xff] %vm112, %v160
    %163 = vst.msk [vmem:[%s15 + $0x8] sm:$0xff] %vm112, %v161
    %v164 = vld [vmem:[%s8] sm:$0xff]
    %v165 = vld [vmem:[%s7] sm:$0xff]
    %v166 = vld [vmem:[%s7 + $0x8] sm:$0xff]
    %v167 = vld [vmem:[%s10] sm:$0xff]
    %v168 = vld [vmem:[%s10 + $0x8] sm:$0xff]
    %v169 = vld [vmem:[%s10 + $0x10] sm:$0xff]
    %v170 = vld [vmem:[%s10 + $0x18] sm:$0xff]
    %v172 = vsel %vm70, %v61, 0
    %174 = vmatpush.msra.mxu0 0.0
    %175 = vmatpush.msra.mxu0 0.0
    %176 = vmatpush.msra.mxu0 0.0
    %177 = vmatpush.msra.mxu0 0.0
    %178 = vmatpush.msra.mxu0 0.0
    %179 = vmatpush.msra.mxu0 0.0
    %180 = vmatpush.msra.mxu0 0.0
    %181 = vmatpush.msra.mxu0 0.0
    %182 = vmatpush.msra.mxu0 0.0
    %183 = vmatpush.msra.mxu0 0.0
    %184 = vmatpush.msra.mxu0 0.0
    %185 = vmatpush.msra.mxu0 0.0
    %186 = vmatpush.msra.mxu0 %v170
    %187 = vmatpush.msra.mxu0 %v169
    %188 = vmatpush.msra.mxu0 %v168
    %189 = vmatpush.msra.mxu0 %v167
    %190 = vmatmul.f32.gmra.mxu0 %v172
    %v191 = vpop.f32.mrf.mxu0
    %v192 = vadd.f32 0.0, %v191
    %193 = vdwg.mxu0
    %195 = vset.pattern.permute.xlu0 0
    %196 = vperm.xlu0 %195, %v164
    %v197 = vpop.permute.xlu0 %196
    %v199 = vmul.f32 %v192, %v197
    %vm200 = vcmask 64512
    %v202 = vsel %vm200, %v55, 0
    %v205 = vsel %vm200, %v56, 0
    %207 = vmatpush.msra.mxu0 0.0
    %208 = vmatpush.msra.mxu0 0.0
    %209 = vmatpush.msra.mxu0 0.0
    %210 = vmatpush.msra.mxu0 0.0
    %211 = vmatpush.msra.mxu0 0.0
    %212 = vmatpush.msra.mxu0 0.0
    %213 = vmatpush.msra.mxu0 0.0
    %214 = vmatpush.msra.mxu0 0.0
    %215 = vmatpush.msra.mxu0 0.0
    %216 = vmatpush.msra.mxu0 0.0
    %217 = vmatpush.msra.mxu0 0.0
    %218 = vmatpush.msra.mxu0 0.0
    %219 = vmatpush.msra.mxu0 0.0
    %220 = vmatpush.msra.mxu0 0.0
    %221 = vmatpush.msra.mxu0 0.0
    %222 = vmatpush.msra.mxu0 %v199
    %223 = vmatmul.f32.gmra.mxu0 %v202
    %v224 = vpop.f32.mrf.mxu0
    %v225 = vadd.f32 0.0, %v224
    %226 = vmatmul.f32.gmra.mxu0 %v205
    %v227 = vpop.f32.mrf.mxu0
    %v228 = vadd.f32 0.0, %v227
    %229 = vdwg.mxu0
    %231 = vset.pattern.permute.xlu0 0
    %232 = vperm.xlu0 %231, %v165
    %v233 = vpop.permute.xlu0 %232
    %236 = vset.pattern.permute.xlu0 0
    %237 = vperm.xlu0 %236, %v166
    %v238 = vpop.permute.xlu0 %237
    %v240 = vmul.f32 %v225, %v233
    %v241 = vmul.f32 %v228, %v238
    %v242 = vld [vmem:[%s13] sm:$0x1]
    %v244 = vperm.slane %v242, 0
    %v246 = vadd.f32 %v240, %v244
    %v247 = vadd.f32 %v241, %v244
    %250 = vrot.lane.b32.xlu0 %v246, 16
    %v251 = vpop.permute.xlu0 %250
    %252 = vrot.lane.b32.xlu0 %v247, 16
    %v253 = vpop.permute.xlu0 %252
    %vm256 = vcmask 261248
    %257 = vst.msk [vmem:[%s15] sm:$0xff] %vm256, %v251
    %258 = vst.msk [vmem:[%s15 + $0x8] sm:$0xff] %vm256, %v253
    %v259 = vld [vmem:[%s7] sm:$0xff]
    %v260 = vld [vmem:[%s7 + $0x8] sm:$0xff]
    %v261 = vld [vmem:[%s8] sm:$0xff]
    %v262 = vld [vmem:[%s11] sm:$0xff]
    %v263 = vld [vmem:[%s11 + $0x8] sm:$0xff]
    %v264 = vld [vmem:[%s11 + $0x10] sm:$0xff]
    %v265 = vld [vmem:[%s11 + $0x18] sm:$0xff]
    %v267 = vsel %vm70, %v59, 0
    %v270 = vsel %vm70, %v60, 0
    %272 = vmatpush.msra.mxu0 0.0
    %273 = vmatpush.msra.mxu0 0.0
    %274 = vmatpush.msra.mxu0 0.0
    %275 = vmatpush.msra.mxu0 0.0
    %276 = vmatpush.msra.mxu0 0.0
    %277 = vmatpush.msra.mxu0 0.0
    %278 = vmatpush.msra.mxu0 0.0
    %279 = vmatpush.msra.mxu0 0.0
    %280 = vmatpush.msra.mxu0 0.0
    %281 = vmatpush.msra.mxu0 0.0
    %282 = vmatpush.msra.mxu0 0.0
    %283 = vmatpush.msra.mxu0 0.0
    %284 = vmatpush.msra.mxu0 %v265
    %285 = vmatpush.msra.mxu0 %v264
    %286 = vmatpush.msra.mxu0 %v263
    %287 = vmatpush.msra.mxu0 %v262
    %288 = vmatmul.f32.gmra.mxu0 %v267
    %v289 = vpop.f32.mrf.mxu0
    %v290 = vadd.f32 0.0, %v289
    %291 = vmatmul.f32.gmra.mxu0 %v270
    %v292 = vpop.f32.mrf.mxu0
    %v293 = vadd.f32 0.0, %v292
    %294 = vdwg.mxu0
    %296 = vset.pattern.permute.xlu0 0
    %297 = vperm.xlu0 %296, %v259
    %v298 = vpop.permute.xlu0 %297
    %301 = vset.pattern.permute.xlu0 0
    %302 = vperm.xlu0 %301, %v260
    %v303 = vpop.permute.xlu0 %302
    %v305 = vmul.f32 %v290, %v298
    %v306 = vmul.f32 %v293, %v303
    %307 = vxpose.xlu0.b32.start [1/16] %v55, 128
    %308 = vxpose.xlu0.b32.cont [2/16] %v56, 128
    %309 = vxpose.xlu0.b32.cont [3/16] 0.0, 128
    %310 = vxpose.xlu0.b32.cont [4/16] 0.0, 128
    %311 = vxpose.xlu0.b32.cont [5/16] 0.0, 128
    %312 = vxpose.xlu0.b32.cont [6/16] 0.0, 128
    %313 = vxpose.xlu0.b32.cont [7/16] 0.0, 128
    %314 = vxpose.xlu0.b32.cont [8/16] 0.0, 128
    %315 = vxpose.xlu0.b32.cont [9/16] 0.0, 128
    %316 = vxpose.xlu0.b32.cont [10/16] 0.0, 128
    %317 = vxpose.xlu0.b32.cont [11/16] 0.0, 128
    %318 = vxpose.xlu0.b32.cont [12/16] 0.0, 128
    %319 = vxpose.xlu0.b32.cont [13/16] 0.0, 128
    %320 = vxpose.xlu0.b32.cont [14/16] 0.0, 128
    %321 = vxpose.xlu0.b32.cont [15/16] 0.0, 128
    %322 = vxpose.xlu0.b32.end [16/16] 0.0, 128
    %v323 = vpop.trf.xlu0
    %v324 = vpop.trf.xlu0
    %v325 = vpop.trf.xlu0
    %v326 = vpop.trf.xlu0
    %v327 = vpop.trf.xlu0
    %v328 = vpop.trf.xlu0
    %v329 = vpop.trf.xlu0
    %v330 = vpop.trf.xlu0
    %v331 = vpop.trf.xlu0
    %v332 = vpop.trf.xlu0
    %v333 = vpop.trf.xlu0
    %v334 = vpop.trf.xlu0
    %v335 = vpop.trf.xlu0
    %v336 = vpop.trf.xlu0
    %v337 = vpop.trf.xlu0
    %v338 = vpop.trf.xlu0
    %v340 = vsel %vm112, %v323, 0
    %342 = vmatpush.msra.mxu0 0.0
    %343 = vmatpush.msra.mxu0 0.0
    %344 = vmatpush.msra.mxu0 0.0
    %345 = vmatpush.msra.mxu0 0.0
    %346 = vmatpush.msra.mxu0 0.0
    %347 = vmatpush.msra.mxu0 0.0
    %348 = vmatpush.msra.mxu0 0.0
    %349 = vmatpush.msra.mxu0 0.0
    %350 = vmatpush.msra.mxu0 0.0
    %351 = vmatpush.msra.mxu0 0.0
    %352 = vmatpush.msra.mxu0 0.0
    %353 = vmatpush.msra.mxu0 0.0
    %354 = vmatpush.msra.mxu0 0.0
    %355 = vmatpush.msra.mxu0 0.0
    %356 = vmatpush.msra.mxu0 %v306
    %357 = vmatpush.msra.mxu0 %v305
    %358 = vmatmul.f32.gmra.mxu0 %v340
    %v359 = vpop.f32.mrf.mxu0
    %v360 = vadd.f32 0.0, %v359
    %361 = vdwg.mxu0
    %363 = vset.pattern.permute.xlu0 0
    %364 = vperm.xlu0 %363, %v261
    %v365 = vpop.permute.xlu0 %364
    %v367 = vmul.f32 %v360, %v365
    %v368 = vld [vmem:[%s14] sm:$0x1]
    %v370 = vperm.slane %v368, 0
    %v372 = vadd.f32 %v367, %v370
    %373 = vst.msk [vmem:[#allocation2] sm:$0xff] %vm112, %v372
    // Predicated region
    $region62: #{gnn_cell_forward.1} parent=1 // pred_check
      _
    $region63: #{gnn_cell_forward.1} parent=1 // pred_check_branch
      %375 = sbr.rel (0) target = $region65
    $region64: #{gnn_cell_forward.1} parent=1 // pred_region
      _
    $region65: #{gnn_cell_forward.1} parent=1 // pred_fallthru
      _
    // Predicated region
    $region66: #{gnn_cell_forward.1} parent=1 // pred_check
      _
    $region67: #{gnn_cell_forward.1} parent=1 // pred_check_branch
      %377 = sbr.rel (0) target = $region69
    $region68: #{gnn_cell_forward.1} parent=1 // pred_region
      %379 = vsyncadd [#allocation3], 0
      %s381 = sshll.u32 [#allocation2], 4
      %s382 = int_to_ptr.vmem [resolvable:$true] %s381
      %s383 = sshll.u32 %s16, 4
      %s384 = int_to_ptr.hbm [resolvable:$true] %s383
      %386 = dma.vmem_to_hbm [thread:$0]  %s382, 128, %s384, [#allocation3]
    $region69: #{gnn_cell_forward.1} parent=1 // pred_fallthru
      _
    // Predicated region
    $region70: #{gnn_cell_forward.1} parent=1 // pred_check
      _
    $region71: #{gnn_cell_forward.1} parent=1 // pred_check_branch
      %388 = sbr.rel (0) target = $region73
    $region72: #{gnn_cell_forward.1} parent=1 // pred_region
      _
    $region73: #{gnn_cell_forward.1} parent=1 // pred_fallthru
      _
    // Predicated region
    $region74: #{gnn_cell_forward.1} parent=1 // pred_check
      _
    $region75: #{gnn_cell_forward.1} parent=1 // pred_check_branch
      %390 = sbr.rel (0) target = $region77
    $region76: #{gnn_cell_forward.1} parent=1 // pred_region
      %392 = dma.done [#allocation3], 128
    $region77: #{gnn_cell_forward.1} parent=1 // pred_fallthru
      _
    %393 = vsyncpa [#allocation3], 1

</llo_original>
